<compile_context>
chip_gen: v7x
topology: tpu7x:2x2x1
jax: 0.10.0
libtpu: 0.0.40
codegen_flags: <defaults>
</compile_context>

<pallas_src>
import functools

import jax
import jax.numpy as jnp
import numpy as np
from jax.experimental import pallas as pl
from jax.experimental.pallas import tpu as pltpu


def _gls_kernel(x_ref, tgt_ref, xt_ref, kl_ref, cnt_ref, *,
                alpha, ignore_index, num_classes, n_rows, tm, steps_per_core):
    c = pl.program_id(0)          # core-split axis ("parallel")
    i = pl.program_id(1)          # row-block axis ("arbitrary", reduction)

    # Per-core partial sums live in the (1,1,1) output blocks, which are
    # resident in VMEM across the arbitrary axis; initialize at step 0.
    @pl.when(i == 0)
    def _():
        kl_ref[...] = jnp.zeros_like(kl_ref)
        cnt_ref[...] = jnp.zeros_like(cnt_ref)

    # Global (unclamped) row-block index.  The BlockSpec index_maps clamp the
    # DMA'd block, and `valid` below discards any duplicated/padded rows.
    g = c * steps_per_core + i

    x_raw = x_ref[...]                                       # (TM, C) input dtype
    t = tgt_ref[...]                                         # (TM, 1) int32
    xt = xt_ref[...]                                         # (TM, 1) f32, x[i, t_i]

    row_ids = g * tm + jax.lax.broadcasted_iota(jnp.int32, (tm, 1), 0)
    valid = jnp.logical_and(row_ids < n_rows, t != ignore_index)     # (TM, 1)

    # Softmax statistics: single exp pass.  Max on the raw dtype (exact) so a
    # full f32 copy is not live across the reduction; cast fused into z.
    m = jnp.max(x_raw, axis=1, keepdims=True).astype(jnp.float32)    # (TM, 1)
    z = x_raw.astype(jnp.float32) - m                                # (TM, C)
    e = jnp.exp(z)
    s = jnp.sum(e, axis=1, keepdims=True)                            # (TM, 1)
    log_s = jnp.log(s)

    zt = xt - m                                # shifted logit at the target class
    logpt = zt - log_s                         # log_softmax at the target class

    Cf = float(num_classes)
    if alpha == 0.0:
        # Static specialization: smoothing is 0 for every row, true_dist is
        # one-hot, so KL reduces to -log_softmax at the target.
        row_kl = -logpt
    else:
        p_max = 1.0 / s                        # exp(z) at the argmax is exactly 1
        sum_logp = jnp.sum(z, axis=1, keepdims=True) - Cf * log_s

        smooth = jnp.full_like(p_max, alpha)
        smooth = jnp.where(p_max >= 0.7, 3.0 * alpha, smooth)
        smooth = jnp.where(p_max <= 0.3, 0.0, smooth)
        u = smooth * (1.0 / (Cf - 1.0))        # off-target probability mass
        v = 1.0 - Cf * u                       # confidence at the target

        safe_u = jnp.where(u > 0, u, 1.0)
        safe_v = jnp.where(v > 0, v, 1.0)
        kl_uniform = jnp.where(
            u > 0,
            u * ((Cf - 1.0) * jnp.log(safe_u) - (sum_logp - logpt)),
            0.0)
        kl_target = jnp.where(v > 0, v * (jnp.log(safe_v) - logpt), 0.0)
        row_kl = kl_uniform + kl_target

    kl_ref[...] += jnp.sum(jnp.where(valid, row_kl, 0.0),
                           keepdims=True).reshape(1, 1, 1)
    cnt_ref[...] += jnp.sum(valid.astype(jnp.float32),
                            keepdims=True).reshape(1, 1, 1)


def graduated_label_smoothing_attn_loss(inputs, targets, *, ignore_index=0,
                                        alpha=0.0, normalize_length=True,
                                        max_rows_per_tile=512):
    """JAX/Pallas equivalent of GraduatedLabelSmoothingAttn.forward."""
    num_classes = inputs.shape[-1]
    batch_size = inputs.shape[0]
    logits = inputs.reshape(-1, num_classes)        # keep input dtype over HBM
    tgt = targets.reshape(-1, 1).astype(jnp.int32)
    n_rows = logits.shape[0]
    itemsize = np.dtype(logits.dtype).itemsize

    # Pre-gather the target logit in the wrapper: touches only N elements
    # (negligible vs the N*C stream) and removes the in-kernel one-hot gather.
    xt = jnp.take_along_axis(logits, tgt, axis=1).astype(jnp.float32)

    # ---- tile sizing (generation-safe) ------------------------------------
    tile_budget_bytes = 4 * 1024 * 1024             # logits tile in its own dtype
    row_cap = max(8, (int(max_rows_per_tile) // 8) * 8)
    tm_cap = (tile_budget_bytes // max(1, num_classes * itemsize)) // 8 * 8
    tm_cap = max(8, min(tm_cap, row_cap))
    tm = n_rows if n_rows <= tm_cap else tm_cap     # full-extent block or /8 tile

    nblocks = pl.cdiv(n_rows, tm)
    ncores = 2 if nblocks >= 2 else 1               # leading "parallel" axis (v7x)
    steps_per_core = pl.cdiv(nblocks, ncores)
    grid = (ncores, steps_per_core)
    last_block = nblocks - 1

    def tile_map(c, i):
        # Clamp so the padded core/step never issues an out-of-bounds DMA;
        # those rows are masked out in-kernel via row_ids.
        return (jnp.minimum(c * steps_per_core + i, last_block), 0)

    def out_map(c, i):
        return (c, 0, 0)

    # VMEM footprint: double-buffered inputs + f32 intermediates (z, e, slack);
    # cap at 48 MiB so it stays inside v7x's 64 MiB per-TC physical VMEM.
    tile_in_bytes = tm * num_classes * itemsize
    est_vmem = 2 * (tile_in_bytes + 2 * tm * 4) + 3 * tm * num_classes * 4 + (1 << 20)
    vmem_limit = int(min(48 * 1024 * 1024, max(32 * 1024 * 1024, est_vmem)))

    kernel = functools.partial(
        _gls_kernel,
        alpha=float(alpha),
        ignore_index=int(ignore_index),
        num_classes=int(num_classes),
        n_rows=int(n_rows),
        tm=int(tm),
        steps_per_core=int(steps_per_core),
    )

    cost = pl.CostEstimate(
        flops=6 * n_rows * num_classes,
        transcendentals=n_rows * num_classes + 4 * n_rows,
        bytes_accessed=n_rows * num_classes * itemsize + 8 * n_rows + 16,
    )

    kl_part, cnt_part = pl.pallas_call(
        kernel,
        out_shape=(jax.ShapeDtypeStruct((ncores, 1, 1), jnp.float32),
                   jax.ShapeDtypeStruct((ncores, 1, 1), jnp.float32)),
        grid_spec=pltpu.PrefetchScalarGridSpec(
            num_scalar_prefetch=0,
            grid=grid,
            in_specs=[
                pl.BlockSpec((tm, num_classes), tile_map),   # logits tile
                pl.BlockSpec((tm, 1), tile_map),             # targets tile
                pl.BlockSpec((tm, 1), tile_map),             # pre-gathered target logits
            ],
            out_specs=[
                pl.BlockSpec((1, 1, 1), out_map),            # per-core kl partial
                pl.BlockSpec((1, 1, 1), out_map),            # per-core valid-count partial
            ],
        ),
        compiler_params=pltpu.CompilerParams(
            dimension_semantics=("parallel", "arbitrary"),
            vmem_limit_bytes=vmem_limit,
        ),
        cost_estimate=cost,
    )(logits, tgt, xt)

    kl_total = jnp.sum(kl_part)
    if normalize_length:
        denom = jnp.sum(cnt_part)        # NOTE: 0/0 -> nan if every row ignored (same as PyTorch)
    else:
        denom = jnp.float32(batch_size)
    return kl_total / denom


def _reference_loss_numpy(inputs, targets, *, ignore_index=0, alpha=0.0,
                          normalize_length=True):
    """Pure-numpy reference mirroring the PyTorch module exactly."""
    C = inputs.shape[-1]
    batch_size = inputs.shape[0]
    x = np.asarray(inputs, dtype=np.float32).reshape(-1, C)
    t = np.asarray(targets).reshape(-1).astype(np.int64)
    m = x.max(axis=1, keepdims=True)
    z = x - m
    e = np.exp(z)
    s = e.sum(axis=1, keepdims=True)
    p = e / s
    logp = z - np.log(s)
    p_max = p.max(axis=1)
    smoothing = np.full_like(x, alpha, dtype=np.float32)
    smoothing[p_max >= 0.7, :] = 3 * alpha
    smoothing[p_max <= 0.3, :] = 0.0
    true_dist = smoothing / (C - 1)
    confidence = 1.0 - true_dist.sum(-1)
    ignore = t == ignore_index
    total = len(t) - ignore.sum()
    true_dist[np.arange(len(t)), t] = confidence
    safe_td = np.where(true_dist > 0, true_dist, 1.0)
    kl = np.where(true_dist > 0, true_dist * (np.log(safe_td) - logp), 0.0)
    kl[ignore, :] = 0.0
    denom = total if normalize_length else batch_size
    return np.float32(kl.sum() / denom)


if __name__ == "__main__":
    key = jax.random.PRNGKey(0)
    k1, k2, k3, k4 = jax.random.split(key, 4)

    # Test 1: small shapes (batch=2, seq=8, classes=8), single tile.
    batch, seq, num_classes = 2, 8, 8
    inputs = 2.0 * jax.random.normal(k1, (batch, seq, num_classes), dtype=jnp.float32)
    targets = jax.random.randint(k2, (batch, seq), 0, num_classes, dtype=jnp.int32)
    targets = targets.at[0, 0].set(1)   # guarantee at least one non-ignored row

    loss = graduated_label_smoothing_attn_loss(inputs, targets, alpha=0.1)
    loss = jax.block_until_ready(loss)
    ref = _reference_loss_numpy(np.asarray(inputs), np.asarray(targets), alpha=0.1)
    np.testing.assert_allclose(np.asarray(loss), ref, rtol=1e-5, atol=1e-5)

    # Test 2: multi-tile grid with a partial final tile (exercises the core
    # split, the clamped padded block and the in-bounds row mask).
    batch2, seq2, num_classes2 = 4, 37, 128   # N = 148 rows
    inputs2 = 2.0 * jax.random.normal(k3, (batch2, seq2, num_classes2), dtype=jnp.float32)
    targets2 = jax.random.randint(k4, (batch2, seq2), 0, num_classes2, dtype=jnp.int32)
    targets2 = targets2.at[0, 0].set(3)

    loss2 = graduated_label_smoothing_attn_loss(
        inputs2, targets2, alpha=0.1, max_rows_per_tile=64)
    loss2 = jax.block_until_ready(loss2)
    ref2 = _reference_loss_numpy(np.asarray(inputs2), np.asarray(targets2), alpha=0.1)
    np.testing.assert_allclose(np.asarray(loss2), ref2, rtol=1e-4, atol=1e-5)

    # Test 3: alpha == 0 static specialization (row_kl = -log_softmax at target).
    loss3 = graduated_label_smoothing_attn_loss(inputs, targets, alpha=0.0)
    loss3 = jax.block_until_ready(loss3)
    ref3 = _reference_loss_numpy(np.asarray(inputs), np.asarray(targets), alpha=0.0)
    np.testing.assert_allclose(np.asarray(loss3), ref3, rtol=1e-5, atol=1e-5)

    print("KERNEL_OK")
</pallas_src>

<mosaic_0001>
module attributes {stable_mosaic.version = 11 : i64} {
  func.func @_gls_kernel(%arg0: i32, %arg1: i32, %arg2: memref<16x8xf32, #tpu.memory_space<vmem>>, %arg3: memref<16x1xi32, #tpu.memory_space<vmem>>, %arg4: memref<16x1xf32, #tpu.memory_space<vmem>>, %arg5: memref<1x1x1xf32, #tpu.memory_space<vmem>>, %arg6: memref<1x1x1xf32, #tpu.memory_space<vmem>>) attributes {dimension_semantics = [#tpu.dimension_semantics<parallel>, #tpu.dimension_semantics<arbitrary>], iteration_bounds = array<i64: 1, 1>, scalar_prefetch = 0 : i64, scratch_operands = 0 : i64, tpu.core_type = #tpu.core_type<tc>, window_params = [{transform_indices = @transform_0, window_bounds = array<i64: 16, 8>}, {transform_indices = @transform_1, window_bounds = array<i64: 16, 1>}, {transform_indices = @transform_2, window_bounds = array<i64: 16, 1>}, {transform_indices = @transform_3, window_bounds = array<i64: 1, 1, 1>}, {transform_indices = @transform_4, window_bounds = array<i64: 1, 1, 1>}]} {
    %c0_i32 = arith.constant 0 : i32
    %0 = arith.cmpi eq, %arg1, %c0_i32 : i32
    %1 = arith.extui %0 : i1 to i32
    %c0_i32_0 = arith.constant 0 : i32
    %2 = arith.cmpi ne, %1, %c0_i32_0 : i32
    scf.if %2 {
      %cst_44 = arith.constant 0.000000e+00 : f32
      %97 = vector.broadcast %cst_44 : f32 to vector<1x1x1xf32>
      %c0_45 = arith.constant 0 : index
      %c0_46 = arith.constant 0 : index
      %c0_47 = arith.constant 0 : index
      %98 = vector.load %arg5[%c0_45, %c0_46, %c0_47] : memref<1x1x1xf32, #tpu.memory_space<vmem>>, vector<1x1x1xf32>
      tpu.vector_store %arg5[%c0_45, %c0_46, %c0_47], %97 {strides = array<i32>} : memref<1x1x1xf32, #tpu.memory_space<vmem>>, vector<1x1x1xf32>,
      %cst_48 = arith.constant 0.000000e+00 : f32
      %99 = vector.broadcast %cst_48 : f32 to vector<1x1x1xf32>
      %c0_49 = arith.constant 0 : index
      %c0_50 = arith.constant 0 : index
      %c0_51 = arith.constant 0 : index
      %100 = vector.load %arg6[%c0_49, %c0_50, %c0_51] : memref<1x1x1xf32, #tpu.memory_space<vmem>>, vector<1x1x1xf32>
      tpu.vector_store %arg6[%c0_49, %c0_50, %c0_51], %99 {strides = array<i32>} : memref<1x1x1xf32, #tpu.memory_space<vmem>>, vector<1x1x1xf32>,
    } else {
    }
    %c1_i32 = arith.constant 1 : i32
    %3 = arith.muli %arg0, %c1_i32 : i32
    %4 = arith.addi %3, %arg1 : i32
    %c0 = arith.constant 0 : index
    %c0_1 = arith.constant 0 : index
    %5 = vector.load %arg2[%c0, %c0_1] : memref<16x8xf32, #tpu.memory_space<vmem>>, vector<16x8xf32>
    %c0_2 = arith.constant 0 : index
    %c0_3 = arith.constant 0 : index
    %6 = vector.load %arg3[%c0_2, %c0_3] : memref<16x1xi32, #tpu.memory_space<vmem>>, vector<16x1xi32>
    %c0_4 = arith.constant 0 : index
    %c0_5 = arith.constant 0 : index
    %7 = vector.load %arg4[%c0_4, %c0_5] : memref<16x1xf32, #tpu.memory_space<vmem>>, vector<16x1xf32>
    %c16_i32 = arith.constant 16 : i32
    %8 = arith.muli %4, %c16_i32 : i32
    %9 = tpu.iota {dimensions = array<i32: 0>} : vector<16x1xi32>
    %10 = vector.broadcast %8 : i32 to vector<16x1xi32>
    %11 = arith.addi %10, %9 : vector<16x1xi32>
    %c16_i32_6 = arith.constant 16 : i32
    %12 = vector.broadcast %c16_i32_6 : i32 to vector<16x1xi32>
    %13 = arith.cmpi slt, %11, %12 : vector<16x1xi32>
    %c0_i32_7 = arith.constant 0 : i32
    %14 = vector.broadcast %c0_i32_7 : i32 to vector<16x1xi32>
    %15 = arith.cmpi ne, %6, %14 : vector<16x1xi32>
    %16 = arith.andi %13, %15 : vector<16x1xi1>
    %cst = arith.constant dense<0xFF800000> : vector<16xf32>
    %17 = vector.multi_reduction <maximumf>, %5, %cst [1] : vector<16x8xf32> to vector<16xf32>
    %18 = vector.shape_cast %17 : vector<16xf32> to vector<16x1xf32>
    %19 = vector.broadcast %18 : vector<16x1xf32> to vector<16x8xf32>
    %20 = arith.subf %5, %19 : vector<16x8xf32>
    %21 = math.exp %20 : vector<16x8xf32>
    %cst_8 = arith.constant dense<0.000000e+00> : vector<16xf32>
    %22 = vector.multi_reduction <add>, %21, %cst_8 [1] : vector<16x8xf32> to vector<16xf32>
    %23 = vector.shape_cast %22 : vector<16xf32> to vector<16x1xf32>
    %24 = math.log %23 : vector<16x1xf32>
    %25 = arith.subf %7, %18 : vector<16x1xf32>
    %26 = arith.subf %25, %24 : vector<16x1xf32>
    %cst_9 = arith.constant 1.000000e+00 : f32
    %27 = vector.broadcast %cst_9 : f32 to vector<16x1xf32>
    %28 = arith.divf %27, %23 : vector<16x1xf32>
    %cst_10 = arith.constant dense<0.000000e+00> : vector<16xf32>
    %29 = vector.multi_reduction <add>, %20, %cst_10 [1] : vector<16x8xf32> to vector<16xf32>
    %30 = vector.shape_cast %29 : vector<16xf32> to vector<16x1xf32>
    %cst_11 = arith.constant 8.000000e+00 : f32
    %31 = vector.broadcast %cst_11 : f32 to vector<16x1xf32>
    %32 = arith.mulf %31, %24 : vector<16x1xf32>
    %33 = arith.subf %30, %32 : vector<16x1xf32>
    %cst_12 = arith.constant 1.000000e-01 : f32
    %34 = vector.broadcast %cst_12 : f32 to vector<16x1xf32>
    %cst_13 = arith.constant 0.699999988 : f32
    %35 = vector.broadcast %cst_13 : f32 to vector<16x1xf32>
    %36 = arith.cmpf oge, %28, %35 : vector<16x1xf32>
    %cst_14 = arith.constant 3.000000e-01 : f32
    %37 = vector.broadcast %cst_14 : f32 to vector<16x1xf32>
    %38 = arith.select %36, %37, %34 : vector<16x1xi1>, vector<16x1xf32>
    %cst_15 = arith.constant 3.000000e-01 : f32
    %39 = vector.broadcast %cst_15 : f32 to vector<16x1xf32>
    %40 = arith.cmpf ole, %28, %39 : vector<16x1xf32>
    %cst_16 = arith.constant 0.000000e+00 : f32
    %41 = vector.broadcast %cst_16 : f32 to vector<16x1xf32>
    %42 = arith.select %40, %41, %38 : vector<16x1xi1>, vector<16x1xf32>
    %cst_17 = arith.constant 0.142857149 : f32
    %43 = vector.broadcast %cst_17 : f32 to vector<16x1xf32>
    %44 = arith.mulf %42, %43 : vector<16x1xf32>
    %cst_18 = arith.constant 8.000000e+00 : f32
    %45 = vector.broadcast %cst_18 : f32 to vector<16x1xf32>
    %46 = arith.mulf %45, %44 : vector<16x1xf32>
    %cst_19 = arith.constant 1.000000e+00 : f32
    %47 = vector.broadcast %cst_19 : f32 to vector<16x1xf32>
    %48 = arith.subf %47, %46 : vector<16x1xf32>
    %cst_20 = arith.constant 0.000000e+00 : f32
    %49 = vector.broadcast %cst_20 : f32 to vector<16x1xf32>
    %50 = arith.cmpf ogt, %44, %49 : vector<16x1xf32>
    %cst_21 = arith.constant 1.000000e+00 : f32
    %51 = vector.broadcast %cst_21 : f32 to vector<16x1xf32>
    %52 = arith.select %50, %44, %51 : vector<16x1xi1>, vector<16x1xf32>
    %cst_22 = arith.constant 0.000000e+00 : f32
    %53 = vector.broadcast %cst_22 : f32 to vector<16x1xf32>
    %54 = arith.cmpf ogt, %48, %53 : vector<16x1xf32>
    %cst_23 = arith.constant 1.000000e+00 : f32
    %55 = vector.broadcast %cst_23 : f32 to vector<16x1xf32>
    %56 = arith.select %54, %48, %55 : vector<16x1xi1>, vector<16x1xf32>
    %cst_24 = arith.constant 0.000000e+00 : f32
    %57 = vector.broadcast %cst_24 : f32 to vector<16x1xf32>
    %58 = arith.cmpf ogt, %44, %57 : vector<16x1xf32>
    %59 = math.log %52 : vector<16x1xf32>
    %cst_25 = arith.constant 7.000000e+00 : f32
    %60 = vector.broadcast %cst_25 : f32 to vector<16x1xf32>
    %61 = arith.mulf %60, %59 : vector<16x1xf32>
    %62 = arith.subf %33, %26 : vector<16x1xf32>
    %63 = arith.subf %61, %62 : vector<16x1xf32>
    %64 = arith.mulf %44, %63 : vector<16x1xf32>
    %cst_26 = arith.constant 0.000000e+00 : f32
    %65 = vector.broadcast %cst_26 : f32 to vector<16x1xf32>
    %66 = arith.select %58, %64, %65 : vector<16x1xi1>, vector<16x1xf32>
    %cst_27 = arith.constant 0.000000e+00 : f32
    %67 = vector.broadcast %cst_27 : f32 to vector<16x1xf32>
    %68 = arith.cmpf ogt, %48, %67 : vector<16x1xf32>
    %69 = math.log %56 : vector<16x1xf32>
    %70 = arith.subf %69, %26 : vector<16x1xf32>
    %71 = arith.mulf %48, %70 : vector<16x1xf32>
    %cst_28 = arith.constant 0.000000e+00 : f32
    %72 = vector.broadcast %cst_28 : f32 to vector<16x1xf32>
    %73 = arith.select %68, %71, %72 : vector<16x1xi1>, vector<16x1xf32>
    %74 = arith.addf %66, %73 : vector<16x1xf32>
    %c0_29 = arith.constant 0 : index
    %c0_30 = arith.constant 0 : index
    %c0_31 = arith.constant 0 : index
    %75 = vector.load %arg5[%c0_29, %c0_30, %c0_31] : memref<1x1x1xf32, #tpu.memory_space<vmem>>, vector<1x1x1xf32>
    %cst_32 = arith.constant 0.000000e+00 : f32
    %76 = vector.broadcast %cst_32 : f32 to vector<16x1xf32>
    %77 = arith.select %16, %74, %76 : vector<16x1xi1>, vector<16x1xf32>
    %78 = vector.shape_cast %77 : vector<16x1xf32> to vector<1x16x1xf32>
    %cst_33 = arith.constant dense<0.000000e+00> : vector<1xf32>
    %79 = vector.multi_reduction <add>, %78, %cst_33 [1, 2] : vector<1x16x1xf32> to vector<1xf32>
    %80 = vector.shape_cast %79 : vector<1xf32> to vector<1x1x1xf32>
    %81 = vector.extract %80[0, 0, 0] : f32 from vector<1x1x1xf32>
    %82 = vector.broadcast %81 : f32 to vector<1x1xf32>
    %83 = vector.shape_cast %82 : vector<1x1xf32> to vector<1x1x1xf32>
    %84 = arith.addf %75, %83 : vector<1x1x1xf32>
    %c0_34 = arith.constant 0 : index
    %c0_35 = arith.constant 0 : index
    %c0_36 = arith.constant 0 : index
    %85 = vector.load %arg5[%c0_34, %c0_35, %c0_36] : memref<1x1x1xf32, #tpu.memory_space<vmem>>, vector<1x1x1xf32>
    tpu.vector_store %arg5[%c0_34, %c0_35, %c0_36], %84 {strides = array<i32>} : memref<1x1x1xf32, #tpu.memory_space<vmem>>, vector<1x1x1xf32>,
    %c0_37 = arith.constant 0 : index
    %c0_38 = arith.constant 0 : index
    %c0_39 = arith.constant 0 : index
    %86 = vector.load %arg6[%c0_37, %c0_38, %c0_39] : memref<1x1x1xf32, #tpu.memory_space<vmem>>, vector<1x1x1xf32>
    %87 = arith.extui %16 : vector<16x1xi1> to vector<16x1xi32>
    %88 = arith.sitofp %87 : vector<16x1xi32> to vector<16x1xf32>
    %89 = vector.shape_cast %88 : vector<16x1xf32> to vector<1x16x1xf32>
    %cst_40 = arith.constant dense<0.000000e+00> : vector<1xf32>
    %90 = vector.multi_reduction <add>, %89, %cst_40 [1, 2] : vector<1x16x1xf32> to vector<1xf32>
    %91 = vector.shape_cast %90 : vector<1xf32> to vector<1x1x1xf32>
    %92 = vector.extract %91[0, 0, 0] : f32 from vector<1x1x1xf32>
    %93 = vector.broadcast %92 : f32 to vector<1x1xf32>
    %94 = vector.shape_cast %93 : vector<1x1xf32> to vector<1x1x1xf32>
    %95 = arith.addf %86, %94 : vector<1x1x1xf32>
    %c0_41 = arith.constant 0 : index
    %c0_42 = arith.constant 0 : index
    %c0_43 = arith.constant 0 : index
    %96 = vector.load %arg6[%c0_41, %c0_42, %c0_43] : memref<1x1x1xf32, #tpu.memory_space<vmem>>, vector<1x1x1xf32>
    tpu.vector_store %arg6[%c0_41, %c0_42, %c0_43], %95 {strides = array<i32>} : memref<1x1x1xf32, #tpu.memory_space<vmem>>, vector<1x1x1xf32>,
    return
  }
  func.func @transform_0(%arg0: i32, %arg1: i32) -> (i32, i32) {
    %c1_i32 = arith.constant 1 : i32
    %0 = arith.muli %arg0, %c1_i32 : i32
    %1 = arith.addi %0, %arg1 : i32
    %c0_i32 = arith.constant 0 : i32
    %2 = arith.minsi %1, %c0_i32 : i32
    %c0_i32_0 = arith.constant 0 : i32
    %c0_i32_1 = arith.constant 0 : i32
    return %2, %c0_i32_0 : i32, i32
  }
  func.func @transform_1(%arg0: i32, %arg1: i32) -> (i32, i32) {
    %c1_i32 = arith.constant 1 : i32
    %0 = arith.muli %arg0, %c1_i32 : i32
    %1 = arith.addi %0, %arg1 : i32
    %c0_i32 = arith.constant 0 : i32
    %2 = arith.minsi %1, %c0_i32 : i32
    %c0_i32_0 = arith.constant 0 : i32
    %c0_i32_1 = arith.constant 0 : i32
    return %2, %c0_i32_0 : i32, i32
  }
  func.func @transform_2(%arg0: i32, %arg1: i32) -> (i32, i32) {
    %c1_i32 = arith.constant 1 : i32
    %0 = arith.muli %arg0, %c1_i32 : i32
    %1 = arith.addi %0, %arg1 : i32
    %c0_i32 = arith.constant 0 : i32
    %2 = arith.minsi %1, %c0_i32 : i32
    %c0_i32_0 = arith.constant 0 : i32
    %c0_i32_1 = arith.constant 0 : i32
    return %2, %c0_i32_0 : i32, i32
  }
  func.func @transform_3(%arg0: i32, %arg1: i32) -> (i32, i32, i32) {
    %c0_i32 = arith.constant 0 : i32
    %c0_i32_0 = arith.constant 0 : i32
    %c0_i32_1 = arith.constant 0 : i32
    return %arg0, %c0_i32, %c0_i32_0 : i32, i32, i32
  }
  func.func @transform_4(%arg0: i32, %arg1: i32) -> (i32, i32, i32) {
    %c0_i32 = arith.constant 0 : i32
    %c0_i32_0 = arith.constant 0 : i32
    %c0_i32_1 = arith.constant 0 : i32
    return %arg0, %c0_i32, %c0_i32_0 : i32, i32, i32
  }
}

</mosaic_0001>

<llo_original>
// kernel: tpu_custom_call.1
$region0: #{tpu_custom_call.1}
  #allocation0 [shape = 'u32[]', space=smem, size = 0x4, offset = 0x4, fixed_abs, tag = 'smem constant byte address 0x4 - core index']
  #allocation1 [shape = 'u32[144,128]{1,0:T(1,128)}', space=vmem, size = 0x12000, scoped, tag = 'internal scratch']
  %s0 = inlined_call_operand.vmem [shape: f32[16,8], index: 0, kind: input, shape index: {}]
  %s1 = inlined_call_operand.vmem [shape: s32[16,1], index: 1, kind: input, shape index: {}]
  %s2 = inlined_call_operand.vmem [shape: f32[16,1], index: 2, kind: input, shape index: {}]
  %s3 = inlined_call_operand.hbm [shape: f32[1,1,1], index: 3, kind: output, shape index: {0}]
  %s4 = inlined_call_operand.hbm [shape: f32[1,1,1], index: 4, kind: output, shape index: {1}]
  %5 = xla_tuple %s3, %s4
  %s6 = sld [smem:[#allocation0]]
  $region34: #{tpu_custom_call.1} parent=0
    _
  %s8 = ssub.s32 1, %s6
  %s9 = scalar_select 0, %s8, %s6
  $region1: #{tpu_custom_call.1} parent=0
    #allocation2 [shape = 'u8[512]{0}', space=vmem, size = 0x400, scoped, tag = 'output window, operand 0, single buffered']
    #allocation3 [shape = 's32[1]{0}', space=sflag, size = 0x4, scoped, tag = 'scoped memory for tpu_custom_call.1']
    #allocation4 [shape = 'u8[512]{0}', space=vmem, size = 0x400, scoped, tag = 'output window, operand 1, single buffered']
    #allocation5 [shape = 's32[1]{0}', space=sflag, size = 0x4, scoped, tag = 'scoped memory for tpu_custom_call.1']
    %10 = vsyncpa [#allocation3], 0
    %11 = vsyncpa [#allocation5], 0
    // Predicated region
    $region2: #{tpu_custom_call.1} parent=1 // pred_check
      _
    $region3: #{tpu_custom_call.1} parent=1 // pred_check_branch
      %13 = sbr.rel (0) target = $region5
    $region4: #{tpu_custom_call.1} parent=1 // pred_region
      %s14 = sadd.s32 0, 0
      %p15 = scmp.lt.s32.totalorder %s14, 0
      %s16 = scalar_select %p15, %s14, 0
      %s17 = smul.u32 2, %s16
      %p18 = scmp.lt.s32.totalorder %s17, 1
      %s19 = scalar_select %p18, %s17, 1
      %s20 = smul.addr %s19, 8
      %s21 = scalar_lea.vmem %s0, %s20
      %s22 = sadd.s32 0, 0
      %p23 = scmp.lt.s32.totalorder %s22, 0
      %s24 = scalar_select %p23, %s22, 0
      %s25 = smul.u32 2, %s24
    $region5: #{tpu_custom_call.1} parent=1 // pred_fallthru
      _
    // Predicated region
    $region6: #{tpu_custom_call.1} parent=1 // pred_check
      _
    $region7: #{tpu_custom_call.1} parent=1 // pred_check_branch
      %27 = sbr.rel (0) target = $region9
    $region8: #{tpu_custom_call.1} parent=1 // pred_region
      %s28 = sadd.s32 0, 0
      %p29 = scmp.lt.s32.totalorder %s28, 0
      %s30 = scalar_select %p29, %s28, 0
      %s31 = smul.u32 2, %s30
      %p32 = scmp.lt.s32.totalorder %s31, 1
      %s33 = scalar_select %p32, %s31, 1
      %s34 = smul.addr %s33, 8
      %s35 = scalar_lea.vmem %s1, %s34
      %s36 = sadd.s32 0, 0
      %p37 = scmp.lt.s32.totalorder %s36, 0
      %s38 = scalar_select %p37, %s36, 0
      %s39 = smul.u32 2, %s38
    $region9: #{tpu_custom_call.1} parent=1 // pred_fallthru
      _
    // Predicated region
    $region10: #{tpu_custom_call.1} parent=1 // pred_check
      _
    $region11: #{tpu_custom_call.1} parent=1 // pred_check_branch
      %41 = sbr.rel (0) target = $region13
    $region12: #{tpu_custom_call.1} parent=1 // pred_region
      %s42 = sadd.s32 0, 0
      %p43 = scmp.lt.s32.totalorder %s42, 0
      %s44 = scalar_select %p43, %s42, 0
      %s45 = smul.u32 2, %s44
      %p46 = scmp.lt.s32.totalorder %s45, 1
      %s47 = scalar_select %p46, %s45, 1
      %s48 = smul.addr %s47, 8
      %s49 = scalar_lea.vmem %s2, %s48
      %s50 = sadd.s32 0, 0
      %p51 = scmp.lt.s32.totalorder %s50, 0
      %s52 = scalar_select %p51, %s50, 0
      %s53 = smul.u32 2, %s52
    $region13: #{tpu_custom_call.1} parent=1 // pred_fallthru
      _
    %s54 = sadd.s32 0, 0
    %p55 = scmp.lt.s32.totalorder %s54, 0
    %s56 = scalar_select %p55, %s54, 0
    %s57 = smul.u32 2, %s56
    %p58 = scmp.lt.s32.totalorder %s57, 1
    %s59 = scalar_select %p58, %s57, 1
    %s60 = smul.addr %s59, 8
    %s61 = scalar_lea.vmem %s0, %s60
    %s62 = sadd.s32 0, 0
    %p63 = scmp.lt.s32.totalorder %s62, 0
    %s64 = scalar_select %p63, %s62, 0
    %s65 = smul.u32 2, %s64
    %p66 = scmp.lt.s32.totalorder %s65, 1
    %s67 = scalar_select %p66, %s65, 1
    %s68 = smul.addr %s67, 8
    %s69 = scalar_lea.vmem %s1, %s68
    %s70 = sadd.s32 0, 0
    %p71 = scmp.lt.s32.totalorder %s70, 0
    %s72 = scalar_select %p71, %s70, 0
    %s73 = smul.u32 2, %s72
    %p74 = scmp.lt.s32.totalorder %s73, 1
    %s75 = scalar_select %p74, %s73, 1
    %s76 = smul.addr %s75, 8
    %s77 = scalar_lea.vmem %s2, %s76
    %s78 = sadd.s32 0, 0
    %p79 = scmp.lt.s32.totalorder %s78, 0
    %s80 = scalar_select %p79, %s78, 0
    %s81 = smul.u32 2, %s80
    %p82 = scmp.lt.s32.totalorder %s81, 1
    %s83 = scalar_select %p82, %s81, 1
    %s84 = smul.addr %s83, 8
    %s85 = scalar_lea.vmem %s0, %s84
    %s86 = sadd.s32 0, 0
    %p87 = scmp.lt.s32.totalorder %s86, 0
    %s88 = scalar_select %p87, %s86, 0
    %s89 = smul.u32 2, %s88
    %s90 = sadd.s32 0, 0
    %p91 = scmp.lt.s32.totalorder %s90, 0
    %s92 = scalar_select %p91, %s90, 0
    %s93 = smul.u32 2, %s92
    %p94 = scmp.lt.s32.totalorder %s93, 1
    %s95 = scalar_select %p94, %s93, 1
    %s96 = smul.addr %s95, 8
    %s97 = scalar_lea.vmem %s1, %s96
    %s98 = sadd.s32 0, 0
    %p99 = scmp.lt.s32.totalorder %s98, 0
    %s100 = scalar_select %p99, %s98, 0
    %s101 = smul.u32 2, %s100
    %s102 = sadd.s32 0, 0
    %p103 = scmp.lt.s32.totalorder %s102, 0
    %s104 = scalar_select %p103, %s102, 0
    %s105 = smul.u32 2, %s104
    %p106 = scmp.lt.s32.totalorder %s105, 1
    %s107 = scalar_select %p106, %s105, 1
    %s108 = smul.addr %s107, 8
    %s109 = scalar_lea.vmem %s2, %s108
    %s110 = sadd.s32 0, 0
    %p111 = scmp.lt.s32.totalorder %s110, 0
    %s112 = scalar_select %p111, %s110, 0
    %s113 = smul.u32 2, %s112
    %p114 = scmp.eq.s32.totalorder 0, 0
    // Predicated region
    $region14: #{tpu_custom_call.1} parent=1 // pred_check
      %p115 = pneg %p114
    $region15: #{tpu_custom_call.1} parent=1 // pred_check_branch
      %117 = sbr.rel (%p115) target = $region17
    $region16: #{tpu_custom_call.1} parent=1 // pred_region
      %vm118 = vcmask 0
      %119 = vst.msk [vmem:[#allocation2] sm:$0x1] %vm118, 0.0
      %120 = vst.msk [vmem:[#allocation4] sm:$0x1] %vm118, 0.0
    $region17: #{tpu_custom_call.1} parent=1 // pred_fallthru
      _
    %s121 = sadd.s32 0, 0
    %v122 = vld [vmem:[%s85] sm:$0xff]
    %v123 = vld [vmem:[%s85 + $0x8] sm:$0xff]
    %v124 = vld [vmem:[%s97] sm:$0xff]
    %v125 = vld [vmem:[%s97 + $0x8] sm:$0xff]
    %v126 = vld [vmem:[%s109] sm:$0xff]
    %v127 = vld [vmem:[%s109 + $0x8] sm:$0xff]
    %s128 = smul.u32 %s121, 16
    %v129 = vlaneseq
    %v130 = vshrl.u32 %v129, 7
    %v131 = vadd.s32 %v130, 8
    %v132 = vstv %s128
    %v133 = vadd.s32 %v132, %v130
    %v134 = vadd.s32 %v132, %v131
    %vm135 = vcmp.lt.s32.totalorder %v133, 16
    %vm136 = vcmp.lt.s32.totalorder %v134, 16
    %vm137 = vcmp.ne.s32.totalorder %v124, 0
    %vm138 = vcmp.ne.s32.totalorder %v125, 0
    %vm139 = vmand %vm135, %vm137
    %vm140 = vmand %vm136, %vm138
    %vm141 = vcmask 64512
    %v142 = vsel %vm141, %v122, -inf
    %143 = vmax.xlane.f32.xlu0 %v142
    %v144 = vpop.xlane.xlu0 %143
    %v145 = vsel %vm141, %v123, -inf
    %146 = vmax.xlane.f32.xlu0 %v145
    %v147 = vpop.xlane.xlu0 %146
    %v148 = vsub.f32 %v122, %v144
    %v149 = vsub.f32 %v123, %v147
    %v150 = vmul.f32 %v148, 1.442695
    %v151 = vpow.pop %v150
    %v152 = vmul.f32 %v149, 1.442695
    %v153 = vpow.pop %v152
    %v154 = vsel %vm141, %v151, 0.0
    %155 = vadd.xlane.f32.xlu0 %v154
    %v156 = vpop.xlane.xlu0 %155
    %v157 = vsel %vm141, %v153, 0.0
    %158 = vadd.xlane.f32.xlu0 %v157
    %v159 = vpop.xlane.xlu0 %158
    %v160 = vlog2.pop %v156
    %v161 = vmul.f32 %v160, 0.6931472
    %v162 = vlog2.pop %v159
    %v163 = vmul.f32 %v162, 0.6931472
    %v164 = vsub.f32 %v126, %v144
    %v165 = vsub.f32 %v127, %v147
    %v166 = vsub.f32 %v164, %v161
    %v167 = vsub.f32 %v165, %v163
    %v168 = vrcp.pop %v156
    %v169 = vmul.f32 1.0, %v168
    %v170 = vrcp.pop %v159
    %v171 = vmul.f32 1.0, %v170
    %v172 = vsel %vm141, %v148, 0.0
    %173 = vadd.xlane.f32.xlu0 %v172
    %v174 = vpop.xlane.xlu0 %173
    %v175 = vsel %vm141, %v149, 0.0
    %176 = vadd.xlane.f32.xlu0 %v175
    %v177 = vpop.xlane.xlu0 %176
    %v178 = vmul.f32 %v161, 8.0
    %v179 = vmul.f32 %v163, 8.0
    %v180 = vsub.f32 %v174, %v178
    %v181 = vsub.f32 %v177, %v179
    %vm182 = vcmp.ge.f32.partialorder %v169, 0.7
    %vm183 = vcmp.ge.f32.partialorder %v171, 0.7
    %v184 = vsel %vm182, 0.3, 0.1
    %v185 = vsel %vm183, 0.3, 0.1
    %vm186 = vcmp.le.f32.partialorder %v169, 0.3
    %vm187 = vcmp.le.f32.partialorder %v171, 0.3
    %v188 = vsel %vm186, 0.0, %v184
    %v189 = vsel %vm187, 0.0, %v185
    %v190 = vmul.f32 %v188, 0.14285715
    %v191 = vmul.f32 %v189, 0.14285715
    %v192 = vmul.f32 %v190, 8.0
    %v193 = vmul.f32 %v191, 8.0
    %v194 = vsub.f32 1.0, %v192
    %v195 = vsub.f32 1.0, %v193
    %vm196 = vcmp.gt.f32.partialorder %v190, 0.0
    %vm197 = vcmp.gt.f32.partialorder %v191, 0.0
    %v198 = vsel %vm196, %v190, 1.0
    %v199 = vsel %vm197, %v191, 1.0
    %vm200 = vcmp.gt.f32.partialorder %v194, 0.0
    %vm201 = vcmp.gt.f32.partialorder %v195, 0.0
    %v202 = vsel %vm200, %v194, 1.0
    %v203 = vsel %vm201, %v195, 1.0
    %v204 = vlog2.pop %v198
    %v205 = vmul.f32 %v204, 0.6931472
    %v206 = vlog2.pop %v199
    %v207 = vmul.f32 %v206, 0.6931472
    %v208 = vmul.f32 %v205, 7.0
    %v209 = vmul.f32 %v207, 7.0
    %v210 = vsub.f32 %v180, %v166
    %v211 = vsub.f32 %v181, %v167
    %v212 = vsub.f32 %v208, %v210
    %v213 = vsub.f32 %v209, %v211
    %v214 = vmul.f32 %v190, %v212
    %v215 = vmul.f32 %v191, %v213
    %v216 = vsel %vm196, %v214, 0.0
    %v217 = vsel %vm197, %v215, 0.0
    %v218 = vlog2.pop %v202
    %v219 = vmul.f32 %v218, 0.6931472
    %v220 = vlog2.pop %v203
    %v221 = vmul.f32 %v220, 0.6931472
    %v222 = vsub.f32 %v219, %v166
    %v223 = vsub.f32 %v221, %v167
    %v224 = vmul.f32 %v194, %v222
    %v225 = vmul.f32 %v195, %v223
    %v226 = vsel %vm200, %v224, 0.0
    %v227 = vsel %vm201, %v225, 0.0
    %v228 = vadd.f32 %v216, %v226
    %v229 = vadd.f32 %v217, %v227
    %v230 = vld [vmem:[#allocation2] sm:$0x1]
    %v231 = vsel %vm139, %v228, 0.0
    %v232 = vsel %vm140, %v229, 0.0
    %vm233 = vcmask 7168
    %v234 = vsel %vm233, %v231, 0.0
    %v235 = vsel %vm233, %v232, 0.0
    %v236 = vadd.f32 %v234, %v235
    %237 = vadd.xlane.f32.xlu0 %v236
    %v238 = vpop.xlane.xlu0 %237
    %v239 = vrot.slane %v238, 4
    %v240 = vadd.f32 %v238, %v239
    %v241 = vrot.slane %v240, 2
    %v242 = vadd.f32 %v240, %v241
    %v243 = vrot.slane %v242, 1
    %v244 = vadd.f32 %v242, %v243
    %s245 = vtos %v244
    %v246 = vstv %s245
    %v247 = vadd.f32 %v230, %v246
    %vm248 = vcmask 0
    %249 = vst.msk [vmem:[#allocation2] sm:$0x1] %vm248, %v247
    %v250 = vld [vmem:[#allocation4] sm:$0x1]
    %v251 = vsel %vm139, 1, 0
    %v252 = vsel %vm140, 1, 0
    %v253 = vcvt.s32.f32 %v251
    %v254 = vcvt.s32.f32 %v252
    %v255 = vsel %vm233, %v253, 0.0
    %v256 = vsel %vm233, %v254, 0.0
    %v257 = vadd.f32 %v255, %v256
    %258 = vadd.xlane.f32.xlu0 %v257
    %v259 = vpop.xlane.xlu0 %258
    %v260 = vrot.slane %v259, 4
    %v261 = vadd.f32 %v259, %v260
    %v262 = vrot.slane %v261, 2
    %v263 = vadd.f32 %v261, %v262
    %v264 = vrot.slane %v263, 1
    %v265 = vadd.f32 %v263, %v264
    %s266 = vtos %v265
    %v267 = vstv %s266
    %v268 = vadd.f32 %v250, %v267
    %269 = vst.msk [vmem:[#allocation4] sm:$0x1] %vm248, %v268
    // Predicated region
    $region18: #{tpu_custom_call.1} parent=1 // pred_check
      _
    $region19: #{tpu_custom_call.1} parent=1 // pred_check_branch
      %271 = sbr.rel (0) target = $region21
    $region20: #{tpu_custom_call.1} parent=1 // pred_region
      %s273 = ssub.s32 16, 16
      %274 = vsyncadd [#allocation3], %s273
      %s276 = sshll.u32 [#allocation2], 4
      %s277 = int_to_ptr.vmem [resolvable:$true] %s276
      %279 = dma.vmem_to_hbm [thread:$0]  %s277, 16, %s3, [#allocation3]
    $region21: #{tpu_custom_call.1} parent=1 // pred_fallthru
      _
    // Predicated region
    $region22: #{tpu_custom_call.1} parent=1 // pred_check
      _
    $region23: #{tpu_custom_call.1} parent=1 // pred_check_branch
      %281 = sbr.rel (0) target = $region25
    $region24: #{tpu_custom_call.1} parent=1 // pred_region
      %s283 = ssub.s32 16, 16
      %284 = vsyncadd [#allocation5], %s283
      %s286 = sshll.u32 [#allocation4], 4
      %s287 = int_to_ptr.vmem [resolvable:$true] %s286
      %289 = dma.vmem_to_hbm [thread:$0]  %s287, 16, %s4, [#allocation5]
    $region25: #{tpu_custom_call.1} parent=1 // pred_fallthru
      _
    // Predicated region
    $region26: #{tpu_custom_call.1} parent=1 // pred_check
      _
    $region27: #{tpu_custom_call.1} parent=1 // pred_check_branch
      %291 = sbr.rel (0) target = $region29
    $region28: #{tpu_custom_call.1} parent=1 // pred_region
      %292 = dma.done [#allocation3], 16
    $region29: #{tpu_custom_call.1} parent=1 // pred_fallthru
      _
    // Predicated region
    $region30: #{tpu_custom_call.1} parent=1 // pred_check
      _
    $region31: #{tpu_custom_call.1} parent=1 // pred_check_branch
      %294 = sbr.rel (0) target = $region33
    $region32: #{tpu_custom_call.1} parent=1 // pred_region
      %295 = dma.done [#allocation5], 16
    $region33: #{tpu_custom_call.1} parent=1 // pred_fallthru
      _
    %296 = vsyncpa [#allocation3], 1
    %297 = vsyncpa [#allocation5], 1

</llo_original>
